<compile_context>
chip_gen: v7x
topology: tpu7x:2x2x1
jax: 0.10.0
libtpu: 0.0.40
codegen_flags: <defaults>
</compile_context>

<pallas_src>
import math

import jax
import jax.numpy as jnp
from jax.experimental import pallas as pl
from jax.experimental.pallas import tpu as pltpu

_HAS_BUFFERED = hasattr(pl, "Buffered")


def _round_up(x, m):
    return ((x + m - 1) // m) * m


def _vmem_limit_bytes():
    """Generation-aware scoped-VMEM budget: ~96 MiB on 128 MiB parts
    (v5e/v6e), <=48 MiB on 64 MiB parts (v7x)."""
    try:
        cap = int(pltpu.get_tpu_info().vmem_capacity_bytes)
    except Exception:
        return 48 * 1024 * 1024
    if cap >= 128 * 1024 * 1024:
        return 96 * 1024 * 1024
    return min(48 * 1024 * 1024, (cap * 3) // 4)


def _const_spec(shape, single_buffer):
    """Constant-index block; optionally single-buffered (halves its VMEM)."""
    index_map = lambda *_: (0,) * len(shape)
    if single_buffer and _HAS_BUFFERED:
        return pl.BlockSpec(shape, index_map, pipeline_mode=pl.Buffered(1))
    return pl.BlockSpec(shape, index_map)


def _with_single_buffer_fallback(build):
    """Try single-buffered constant-index inputs; fall back to default double
    buffering if this jax/libtpu combination rejects pipeline_mode."""
    if _HAS_BUFFERED:
        try:
            return build(True)
        except Exception:
            pass
    return build(False)


def _softmax_lane(x):
    """Kernel-only softmax: divide replaced by EUP reciprocal + 1 Newton step."""
    m = jnp.max(x, axis=-1, keepdims=True)
    e = jnp.exp(x - m)
    s = jnp.sum(e, axis=-1, keepdims=True)
    inv = pl.reciprocal(s, approx=True)
    inv = inv * (2.0 - s * inv)          # Newton step -> ~f32 accuracy
    return e * inv


def _softmax_ref(x):
    m = jnp.max(x, axis=-1, keepdims=True)
    e = jnp.exp(x - m)
    return e / jnp.sum(e, axis=-1, keepdims=True)


# --------------------------------------------------------------------------
# Kernel A: linear  y = x @ W + b  (link_rel_layer over [graph edges ; path])
# --------------------------------------------------------------------------
def _linear_resident_kernel(x_ref, w_ref, b_ref, o_ref):
    acc = jnp.dot(x_ref[...], w_ref[...], preferred_element_type=jnp.float32)
    o_ref[...] = (acc + b_ref[...]).astype(o_ref.dtype)


def _linear_ktiled_kernel(x_ref, w_ref, b_ref, o_ref):
    # K-tiled fallback: accumulate directly into the resident f32 output ref.
    k = pl.program_id(1)

    @pl.when(k == 0)
    def _init():
        o_ref[...] = jnp.broadcast_to(b_ref[...], o_ref.shape)

    o_ref[...] += jnp.dot(x_ref[...], w_ref[...],
                          preferred_element_type=jnp.float32)


def _choose_tile(n, max_tile, align):
    if n <= max_tile:
        return n
    t = (max_tile // align) * align
    while t >= align:
        if n % t == 0:
            return t
        t -= align
    return n


def pallas_linear(x, w_t, b=None, *, compute_dtype=jnp.float32,
                  out_dtype=jnp.float32, max_tm=256,
                  resident_w_bytes=16 * 1024 * 1024):
    M, K = x.shape
    Kw, N = w_t.shape
    assert K == Kw
    f32 = jnp.float32
    # pre-cast MXU operands in the wrapper (halves HBM->VMEM bytes on bf16)
    x = x.astype(compute_dtype)
    w_t = w_t.astype(compute_dtype)
    b2 = jnp.zeros((1, N), f32) if b is None else b.reshape(1, N).astype(f32)

    tm = _choose_tile(M, max_tm, 8)
    nm = M // tm
    vmem_limit = _vmem_limit_bytes()
    w_bytes = K * N * jnp.dtype(compute_dtype).itemsize

    if w_bytes <= resident_w_bytes:
        # W fully VMEM-resident, M-only grid, no accumulator scratch.
        def call(single_buffer):
            res = pl.pallas_call(
                _linear_resident_kernel,
                out_shape=jax.ShapeDtypeStruct((M, N), out_dtype),
                grid=(nm,),
                in_specs=[pl.BlockSpec((tm, K), lambda i: (i, 0)),
                          _const_spec((K, N), single_buffer),
                          _const_spec((1, N), single_buffer)],
                out_specs=pl.BlockSpec((tm, N), lambda i: (i, 0)),
                compiler_params=pltpu.CompilerParams(
                    dimension_semantics=("parallel",),
                    vmem_limit_bytes=vmem_limit),
            )(x, w_t, b2)
            return jax.block_until_ready(res)

        return _with_single_buffer_fallback(call)

    # Very large K*N: K-reduction grid, accumulate straight into the f32 output.
    tk = _choose_tile(K, 512, 128)
    nk = K // tk
    res = pl.pallas_call(
        _linear_ktiled_kernel,
        out_shape=jax.ShapeDtypeStruct((M, N), f32),
        grid=(nm, nk),
        in_specs=[pl.BlockSpec((tm, tk), lambda i, k: (i, k)),
                  pl.BlockSpec((tk, N), lambda i, k: (k, 0)),
                  pl.BlockSpec((1, N), lambda i, k: (0, 0))],
        out_specs=pl.BlockSpec((tm, N), lambda i, k: (i, 0)),
        compiler_params=pltpu.CompilerParams(
            dimension_semantics=("parallel", "arbitrary"),
            vmem_limit_bytes=vmem_limit),
    )(x, w_t, b2)
    return jax.block_until_ready(res.astype(out_dtype))


# --------------------------------------------------------------------------
# Kernel B: fused MultiHeadAttention hot path (num_heads == 1), Nn-tiled grid.
# --------------------------------------------------------------------------
def _make_mha_kernel(Nt, E, P, dm, tn, P_pad, compute_dtype):
    scale = 1.0 / math.sqrt(float(dm))
    f32 = jnp.float32
    cdt = compute_dtype

    def kernel(tid_col_ref, tid_row_ref, meta_ref, x_pair_ref, lin_e_ref,
               lin_p_ref, xf_ref, wq_ref, wqp_ref, wkv_ref, wpkv_ref,
               wout_ref, bout_ref, wagg_ref,
               out_ref, attn_ref,
               kv_e_ref, path_res_ref):
        i = pl.program_id(0)

        # ------------ one-time work (first Nn tile only) ---------------------
        @pl.when(i == 0)
        def _prologue():
            # fused K/V projections: one wide matmul each for edges and path
            kv_e_ref[...] = jnp.dot(
                lin_e_ref[...], wkv_ref[...],
                preferred_element_type=f32).astype(kv_e_ref.dtype)
            kv_p = jnp.dot(lin_p_ref[...], wpkv_ref[...],
                           preferred_element_type=f32)          # (P, 2dm) f32
            k_p = kv_p[:, :dm]
            v_p = kv_p[:, dm:]

            # pair / path attention (tiny, single query row)
            pair_q = jnp.dot(x_pair_ref[...], wqp_ref[...],
                             preferred_element_type=f32)        # (1, dm)
            p_logits = jax.lax.dot_general(
                pair_q, k_p, (((1,), (1,)), ((), ())),
                preferred_element_type=f32) * scale             # (1, P)
            p_att = _softmax_lane(p_logits)
            pv = jnp.dot(p_att, v_p, preferred_element_type=f32)
            path_res_ref[...] = (jnp.dot(pv.astype(cdt), wout_ref[...],
                                         preferred_element_type=f32)
                                 + bout_ref[...])               # (1, dm) f32

            # single lane-dense store of the attention weights
            if P_pad > P:
                attn_ref[...] = jnp.concatenate(
                    [p_att, jnp.zeros((1, P_pad - P), f32)], axis=-1)
            else:
                attn_ref[...] = p_att

            # init the resident output with the unchanged hidden states
            out_ref[...] = xf_ref[...]

        # ------------ per-tile work (every Nn tile) ---------------------------
        tid_col = tid_col_ref[...]                               # (tn, 1) i32
        tid_row = tid_row_ref[...]                               # (1, tn) i32
        meta = meta_ref[...]                                     # (tn, 4) f32
        w_src = meta[:, 0:1]
        w_tar = meta[:, 1:2]
        seg_start = meta[:, 2:3].astype(jnp.int32)
        seg_len = meta[:, 3:4].astype(jnp.int32)

        # gather the tile's selected hidden rows with a one-hot matmul (MXU)
        gather_oh = (jax.lax.broadcasted_iota(jnp.int32, (tn, Nt), 1)
                     == tid_col).astype(f32)                     # (tn, Nt)
        x_sel = jnp.dot(gather_oh, xf_ref[...],
                        preferred_element_type=f32)              # (tn, dm) f32
        q_sel = jnp.dot(x_sel.astype(cdt), wq_ref[...],
                        preferred_element_type=f32)              # (tn, dm)

        # per-node ragged segment attention over the edge axis (masked)
        k_e = kv_e_ref[:, :dm]                                   # (E, dm) cdt
        v_e = kv_e_ref[:, dm:]
        logits = jax.lax.dot_general(
            q_sel.astype(cdt), k_e, (((1,), (1,)), ((), ())),
            preferred_element_type=f32) * scale                  # (tn, E) f32
        edge_iota = jax.lax.broadcasted_iota(jnp.int32, (tn, E), 1)
        mask = (edge_iota >= seg_start) & (edge_iota < seg_start + seg_len)
        att = _softmax_lane(jnp.where(mask, logits, -1e30))
        vals = jnp.dot(att.astype(cdt), v_e, preferred_element_type=f32)
        feats = (jnp.dot(vals.astype(cdt), wout_ref[...],
                         preferred_element_type=f32) + bout_ref[...])
        # TODO(synk): nn.Dropout(0.1) on feats is treated as identity (eval).

        # path aggregation: only the src / tar rows mix in path_res
        path_res = path_res_ref[...]                             # (1, dm) f32
        f_src = jnp.sum(w_src * feats, axis=0, keepdims=True)
        f_tar = jnp.sum(w_tar * feats, axis=0, keepdims=True)
        wa_top = wagg_ref[:dm, :]
        wa_bot = wagg_ref[dm:, :]
        agg_src = (jnp.dot(f_src.astype(cdt), wa_top, preferred_element_type=f32)
                   + jnp.dot(path_res.astype(cdt), wa_bot,
                             preferred_element_type=f32))
        agg_tar = (jnp.dot(path_res.astype(cdt), wa_top, preferred_element_type=f32)
                   + jnp.dot(f_tar.astype(cdt), wa_bot,
                             preferred_element_type=f32))
        rows = w_src * agg_src + w_tar * agg_tar + (1.0 - w_src - w_tar) * feats

        # scatter-accumulate into the resident output block via one-hot matmul.
        # NOTE: duplicate token_ids would be summed here (reference does
        # last-write-wins); nodes with empty segments leave input_f unchanged.
        valid = (seg_len > 0).astype(f32)                        # (tn, 1)
        diff = (rows - x_sel) * valid
        scatter_oh = (jax.lax.broadcasted_iota(jnp.int32, (Nt, tn), 0)
                      == tid_row).astype(f32)                    # (Nt, tn)
        out_ref[...] += jnp.dot(scatter_oh, diff, preferred_element_type=f32)

    return kernel


# --------------------------------------------------------------------------
# TransformerEncoder.forward (tensor part) using the two Pallas kernels.
# --------------------------------------------------------------------------
def transformer_encoder_forward(params, input_f, path_raw, graph_raw,
                                token_ids, starts, lens, pair, rev=True,
                                compute_dtype=jnp.float32):
    f32 = jnp.float32
    cdt = compute_dtype
    dm = params['Wq_T'].shape[1]
    src = pair[1] if rev else pair[0]
    tar = pair[0] if rev else pair[1]

    Nt = int(input_f.shape[0])
    Nn = int(token_ids.shape[0])
    E = int(graph_raw.shape[0])
    P = int(path_raw.shape[0])
    P_pad = _round_up(max(P, 1), 128)

    # -- Kernel A: link_rel_layer over [edges ; path] in ONE resident-W matmul.
    link_in = jnp.concatenate([graph_raw, path_raw], axis=0)      # (E+P, 3dm)
    lin = pallas_linear(link_in, params['Wlink_T'], params['blink'],
                        compute_dtype=cdt, out_dtype=cdt)          # (E+P, dm)
    lin_e, lin_p = lin[:E], lin[E:]

    # -- tiny host/XLA glue; all heavy math stays in the kernels --------------
    token_ids = token_ids.astype(jnp.int32)
    x_pair = jnp.concatenate([input_f[src], input_f[tar]])[None, :].astype(cdt)
    is_src = token_ids == src
    is_tar = jnp.logical_and(token_ids == tar, jnp.logical_not(is_src))
    meta = jnp.stack([is_src.astype(f32), is_tar.astype(f32),
                      starts.astype(f32), lens.astype(f32)], axis=1)  # (Nn, 4)

    tn = min(128, _round_up(Nn, 8))
    Nn_pad = _round_up(Nn, tn)
    tid_col = token_ids[:, None]
    if Nn_pad > Nn:
        pad = Nn_pad - Nn
        tid_col = jnp.concatenate(
            [tid_col, jnp.full((pad, 1), -1, jnp.int32)], axis=0)
        meta = jnp.concatenate([meta, jnp.zeros((pad, 4), f32)], axis=0)
    tid_row = tid_col.reshape(1, Nn_pad)

    # pre-cast weights to the MXU operand dtype; fuse [Wk|Wv] and [Wpk|Wpv].
    wq = params['Wq_T'].astype(cdt)
    wqp = params['Wqpair_T'].astype(cdt)
    wkv = jnp.concatenate([params['Wk_T'], params['Wv_T']], axis=1).astype(cdt)
    wpkv = jnp.concatenate([params['Wpk_T'], params['Wpv_T']],
                           axis=1).astype(cdt)
    wout = params['Wout_T'].astype(cdt)
    wagg = params['Wagg_T'].astype(cdt)
    bout = params['bout'].reshape(1, dm).astype(f32)
    xf = input_f.astype(f32)

    kernel = _make_mha_kernel(Nt=Nt, E=E, P=P, dm=dm, tn=tn, P_pad=P_pad,
                              compute_dtype=cdt)
    grid = (Nn_pad // tn,)
    vmem_limit = _vmem_limit_bytes()

    def call(single_buffer):
        cs = lambda shape: _const_spec(shape, single_buffer)
        in_specs = [
            pl.BlockSpec((tn, 1), lambda i: (i, 0)),   # token ids (column)
            pl.BlockSpec((1, tn), lambda i: (0, i)),   # token ids (row)
            pl.BlockSpec((tn, 4), lambda i: (i, 0)),   # [w_src,w_tar,start,len]
            cs((1, 2 * dm)),                           # x_pair
            cs((E, dm)),                               # lin_e
            cs((P, dm)),                               # lin_p
            cs((Nt, dm)),                              # input_f (aliased)
            cs((dm, dm)),                              # Wq
            cs((2 * dm, dm)),                          # Wq_pair
            cs((dm, 2 * dm)),                          # [Wk | Wv]
            cs((dm, 2 * dm)),                          # [Wpk | Wpv]
            cs((dm, dm)),                              # Wout
            cs((1, dm)),                               # b_out
            cs((2 * dm, dm)),                          # Wagg
        ]
        out_specs = (pl.BlockSpec((Nt, dm), lambda i: (0, 0)),
                     pl.BlockSpec((1, P_pad), lambda i: (0, 0)))
        res = pl.pallas_call(
            kernel,
            out_shape=(jax.ShapeDtypeStruct((Nt, dm), f32),
                       jax.ShapeDtypeStruct((1, P_pad), f32)),
            grid=grid,
            in_specs=in_specs,
            out_specs=out_specs,
            scratch_shapes=[pltpu.VMEM((E, 2 * dm), cdt),   # fused K|V of edges
                            pltpu.VMEM((1, dm), f32)],      # path_res
            input_output_aliases={6: 0},                    # donate input_f
            compiler_params=pltpu.CompilerParams(
                dimension_semantics=("arbitrary",),
                vmem_limit_bytes=vmem_limit),
        )(tid_col, tid_row, meta, x_pair, lin_e, lin_p, xf,
          wq, wqp, wkv, wpkv, wout, bout, wagg)
        return jax.block_until_ready(res)

    out, attn_pad = _with_single_buffer_fallback(call)
    return out, attn_pad[:, :P]


# --------------------------------------------------------------------------
# Pure-JAX reference (mirrors the PyTorch math; dropout = identity)
# --------------------------------------------------------------------------
def reference(params, input_f, path_raw, graph_raw, token_ids, starts, lens,
              pair, rev=True):
    hp = lambda a, b: jnp.dot(a, b, precision=jax.lax.Precision.HIGHEST)
    dm = params['Wq_T'].shape[1]
    scale = 1.0 / math.sqrt(dm)
    src = pair[1] if rev else pair[0]
    tar = pair[0] if rev else pair[1]

    path_proj = hp(path_raw, params['Wlink_T']) + params['blink']
    edg = hp(graph_raw, params['Wlink_T']) + params['blink']
    pair_in = jnp.concatenate([input_f[src], input_f[tar]])[None, :]
    pair_q = hp(pair_in, params['Wqpair_T'])
    qp = hp(input_f, params['Wq_T'])
    pathk = hp(path_proj, params['Wpk_T'])
    pathv = hp(path_proj, params['Wpv_T'])
    kp = hp(edg, params['Wk_T'])
    vp = hp(edg, params['Wv_T'])

    p_att = _softmax_ref(hp(pair_q, pathk.T) * scale)
    path_res = hp(hp(p_att, pathv), params['Wout_T']) + params['bout']

    returned = jnp.array(input_f)
    for i in range(int(token_ids.shape[0])):
        t = int(token_ids[i]); s = int(starts[i]); l = int(lens[i])
        q_ = qp[t:t + 1]
        k_ = kp[s:s + l]
        v_ = vp[s:s + l]
        a = _softmax_ref(hp(q_, k_.T) * scale)
        feat = hp(hp(a, v_), params['Wout_T']) + params['bout']
        if t == src:
            row = hp(jnp.concatenate([feat, path_res], axis=1), params['Wagg_T'])
        elif t == tar:
            row = hp(jnp.concatenate([path_res, feat], axis=1), params['Wagg_T'])
        else:
            row = feat
        returned = returned.at[t].set(row[0])
    return returned, p_att


def init_params(key, dm):
    keys = jax.random.split(key, 11)

    def w(k, shape, fan_in):
        return jax.random.normal(k, shape, jnp.float32) / math.sqrt(fan_in)

    p = {}
    p['Wlink_T'] = w(keys[0], (3 * dm, dm), 3 * dm)
    p['blink'] = 0.1 * jax.random.normal(keys[1], (dm,), jnp.float32)
    p['Wqpair_T'] = w(keys[2], (2 * dm, dm), 2 * dm)
    p['Wq_T'] = w(keys[3], (dm, dm), dm)
    p['Wk_T'] = w(keys[4], (dm, dm), dm)
    p['Wv_T'] = w(keys[5], (dm, dm), dm)
    p['Wpk_T'] = w(keys[6], (dm, dm), dm)
    p['Wpv_T'] = w(keys[7], (dm, dm), dm)
    p['Wout_T'] = w(keys[8], (dm, dm), dm)
    p['bout'] = 0.1 * jax.random.normal(keys[9], (dm,), jnp.float32)
    p['Wagg_T'] = w(keys[10], (2 * dm, dm), 2 * dm)
    return p


if __name__ == "__main__":
    key = jax.random.PRNGKey(0)
    dm = 128         # lane-aligned small dmodel (module default is 1024)
    Nt = 8           # number of tokens (rows of input_f)
    n_rel = 5
    P = 4            # path edges

    params = init_params(key, dm)

    k1, k2 = jax.random.split(jax.random.fold_in(key, 1), 2)
    input_f = jax.random.normal(k1, (Nt, dm), jnp.float32)
    rel_table = jax.random.normal(k2, (n_rel, dm), jnp.float32)

    # TODO(synk): networkx graph construction (create_links / create_path /
    # shortest_path) is host-side glue with no Pallas equivalent; deterministic
    # edge lists are built instead (every per-node edge count > 1).
    token_ids = jnp.arange(Nt, dtype=jnp.int32)
    lens_list = [2, 3, 2, 4, 2, 3, 2, 2]
    lens = jnp.array(lens_list, jnp.int32)
    starts = jnp.concatenate([jnp.zeros((1,), jnp.int32),
                              jnp.cumsum(lens)[:-1].astype(jnp.int32)])
    E = int(sum(lens_list))

    e_src = (jnp.arange(E) * 3) % Nt
    e_tgt = (jnp.arange(E) * 5 + 1) % Nt
    e_rel = jnp.arange(E) % n_rel
    graph_raw = jnp.concatenate(
        [input_f[e_src], rel_table[e_rel], input_f[e_tgt]], axis=1)  # (E, 3dm)

    p_src = (jnp.arange(P) * 2) % Nt
    p_tgt = (jnp.arange(P) * 3 + 2) % Nt
    p_rel = jnp.arange(P) % n_rel
    path_raw = jnp.concatenate(
        [input_f[p_src], rel_table[p_rel], input_f[p_tgt]], axis=1)  # (P, 3dm)

    pair = (1, 5)    # rev=True -> src = pair[1], tar = pair[0]

    ref_out, ref_attn = reference(
        params, input_f, path_raw, graph_raw, token_ids, starts, lens, pair,
        rev=True)

    # ---- f32 MXU operands ----------------------------------------------------
    out, attn = transformer_encoder_forward(
        params, input_f, path_raw, graph_raw, token_ids, starts, lens, pair,
        rev=True, compute_dtype=jnp.float32)
    out = jax.block_until_ready(out)
    attn = jax.block_until_ready(attn)

    assert out.shape == (Nt, dm) and attn.shape == (1, P)
    assert jnp.allclose(out, ref_out, atol=2e-2, rtol=2e-2), \
        float(jnp.max(jnp.abs(out - ref_out)))
    assert jnp.allclose(attn, ref_attn, atol=2e-2, rtol=2e-2), \
        float(jnp.max(jnp.abs(attn - ref_attn)))

    # ---- bf16 MXU operands (pre-cast in the wrapper; f32 accumulation) -------
    out_bf, attn_bf = transformer_encoder_forward(
        params, input_f, path_raw, graph_raw, token_ids, starts, lens, pair,
        rev=True, compute_dtype=jnp.bfloat16)
    out_bf = jax.block_until_ready(out_bf)
    attn_bf = jax.block_until_ready(attn_bf)
    assert jnp.allclose(out_bf, ref_out, atol=1.5e-1, rtol=1.5e-1), \
        float(jnp.max(jnp.abs(out_bf - ref_out)))
    assert jnp.allclose(attn_bf, ref_attn, atol=1.5e-1, rtol=1.5e-1), \
        float(jnp.max(jnp.abs(attn_bf - ref_attn)))

    print("KERNEL_OK")
</pallas_src>

<mosaic_0001>
module attributes {stable_mosaic.version = 11 : i64} {
  func.func @_linear_resident_kernel(%arg0: i32, %arg1: memref<24x384xf32, #tpu.memory_space<vmem>>, %arg2: memref<384x128xf32, #tpu.memory_space<vmem>>, %arg3: memref<1x128xf32, #tpu.memory_space<vmem>>, %arg4: memref<24x128xf32, #tpu.memory_space<vmem>>) attributes {dimension_semantics = [#tpu.dimension_semantics<parallel>], iteration_bounds = array<i64: 1>, scalar_prefetch = 0 : i64, scratch_operands = 0 : i64, tpu.core_type = #tpu.core_type<tc>, window_params = [{transform_indices = @transform_0, window_bounds = array<i64: 24, 384>}, {pipeline_mode = #tpu.pipeline_mode<synchronous>, transform_indices = @transform_1, window_bounds = array<i64: 384, 128>}, {pipeline_mode = #tpu.pipeline_mode<synchronous>, transform_indices = @transform_2, window_bounds = array<i64: 1, 128>}, {transform_indices = @transform_3, window_bounds = array<i64: 24, 128>}]} {
    %c0 = arith.constant 0 : index
    %c0_0 = arith.constant 0 : index
    %0 = vector.load %arg1[%c0, %c0_0] : memref<24x384xf32, #tpu.memory_space<vmem>>, vector<24x384xf32>
    %c0_1 = arith.constant 0 : index
    %c0_2 = arith.constant 0 : index
    %1 = vector.load %arg2[%c0_1, %c0_2] : memref<384x128xf32, #tpu.memory_space<vmem>>, vector<384x128xf32>
    %cst = arith.constant dense<0.000000e+00> : vector<24x128xf32>
    %2 = tpu.matmul %0, %1, %cst {dimension_numbers = #tpu.dot_dimension_numbers<[1], [0], [0], [1], [0, 0, 1, 1], [], []>} : vector<24x384xf32>, vector<384x128xf32>, vector<24x128xf32> -> vector<24x128xf32>
    %c0_3 = arith.constant 0 : index
    %c0_4 = arith.constant 0 : index
    %3 = vector.load %arg3[%c0_3, %c0_4] : memref<1x128xf32, #tpu.memory_space<vmem>>, vector<1x128xf32>
    %4 = vector.broadcast %3 : vector<1x128xf32> to vector<24x128xf32>
    %5 = arith.addf %2, %4 : vector<24x128xf32>
    %c0_5 = arith.constant 0 : index
    %c0_6 = arith.constant 0 : index
    %6 = vector.load %arg4[%c0_5, %c0_6] : memref<24x128xf32, #tpu.memory_space<vmem>>, vector<24x128xf32>
    tpu.vector_store %arg4[%c0_5, %c0_6], %5 {strides = array<i32>} : memref<24x128xf32, #tpu.memory_space<vmem>>, vector<24x128xf32>,
    return
  }
  func.func @transform_0(%arg0: i32) -> (i32, i32) {
    %c0_i32 = arith.constant 0 : i32
    %c0_i32_0 = arith.constant 0 : i32
    return %arg0, %c0_i32 : i32, i32
  }
  func.func @transform_1(%arg0: i32) -> (i32, i32) {
    %c0_i32 = arith.constant 0 : i32
    %c0_i32_0 = arith.constant 0 : i32
    %c0_i32_1 = arith.constant 0 : i32
    return %c0_i32, %c0_i32_0 : i32, i32
  }
  func.func @transform_2(%arg0: i32) -> (i32, i32) {
    %c0_i32 = arith.constant 0 : i32
    %c0_i32_0 = arith.constant 0 : i32
    %c0_i32_1 = arith.constant 0 : i32
    return %c0_i32, %c0_i32_0 : i32, i32
  }
  func.func @transform_3(%arg0: i32) -> (i32, i32) {
    %c0_i32 = arith.constant 0 : i32
    %c0_i32_0 = arith.constant 0 : i32
    return %arg0, %c0_i32 : i32, i32
  }
}

module attributes {stable_mosaic.version = 11 : i64} {
  func.func @_linear_resident_kernel(%arg0: i32, %arg1: memref<24x384xf32, #tpu.memory_space<vmem>>, %arg2: memref<384x128xf32, #tpu.memory_space<vmem>>, %arg3: memref<1x128xf32, #tpu.memory_space<vmem>>, %arg4: memref<24x128xf32, #tpu.memory_space<vmem>>) attributes {dimension_semantics = [#tpu.dimension_semantics<parallel>], iteration_bounds = array<i64: 1>, scalar_prefetch = 0 : i64, scratch_operands = 0 : i64, tpu.core_type = #tpu.core_type<tc>, window_params = [{transform_indices = @transform_0, window_bounds = array<i64: 24, 384>}, {pipeline_mode = #tpu.pipeline_mode<synchronous>, transform_indices = @transform_1, window_bounds = array<i64: 384, 128>}, {pipeline_mode = #tpu.pipeline_mode<synchronous>, transform_indices = @transform_2, window_bounds = array<i64: 1, 128>}, {transform_indices = @transform_3, window_bounds = array<i64: 24, 128>}]} {
    %c0 = arith.constant 0 : index
    %c0_0 = arith.constant 0 : index
    %0 = vector.load %arg1[%c0, %c0_0] : memref<24x384xf32, #tpu.memory_space<vmem>>, vector<24x384xf32>
    %c0_1 = arith.constant 0 : index
    %c0_2 = arith.constant 0 : index
    %1 = vector.load %arg2[%c0_1, %c0_2] : memref<384x128xf32, #tpu.memory_space<vmem>>, vector<384x128xf32>
    %cst = arith.constant dense<0.000000e+00> : vector<24x128xf32>
    %2 = tpu.matmul %0, %1, %cst {dimension_numbers = #tpu.dot_dimension_numbers<[1], [0], [0], [1], [0, 0, 1, 1], [], []>} : vector<24x384xf32>, vector<384x128xf32>, vector<24x128xf32> -> vector<24x128xf32>
    %c0_3 = arith.constant 0 : index
    %c0_4 = arith.constant 0 : index
    %3 = vector.load %arg3[%c0_3, %c0_4] : memref<1x128xf32, #tpu.memory_space<vmem>>, vector<1x128xf32>
    %4 = vector.broadcast %3 : vector<1x128xf32> to vector<24x128xf32>
    %5 = arith.addf %2, %4 : vector<24x128xf32>
    %c0_5 = arith.constant 0 : index
    %c0_6 = arith.constant 0 : index
    %6 = vector.load %arg4[%c0_5, %c0_6] : memref<24x128xf32, #tpu.memory_space<vmem>>, vector<24x128xf32>
    tpu.vector_store %arg4[%c0_5, %c0_6], %5 {strides = array<i32>} : memref<24x128xf32, #tpu.memory_space<vmem>>, vector<24x128xf32>,
    return
  }
  func.func @transform_0(%arg0: i32) -> (i32, i32) {
    %c0_i32 = arith.constant 0 : i32
    %c0_i32_0 = arith.constant 0 : i32
    return %arg0, %c0_i32 : i32, i32
  }
  func.func @transform_1(%arg0: i32) -> (i32, i32) {
    %c0_i32 = arith.constant 0 : i32
    %c0_i32_0 = arith.constant 0 : i32
    %c0_i32_1 = arith.constant 0 : i32
    return %c0_i32, %c0_i32_0 : i32, i32
  }
  func.func @transform_2(%arg0: i32) -> (i32, i32) {
    %c0_i32 = arith.constant 0 : i32
    %c0_i32_0 = arith.constant 0 : i32
    %c0_i32_1 = arith.constant 0 : i32
    return %c0_i32, %c0_i32_0 : i32, i32
  }
  func.func @transform_3(%arg0: i32) -> (i32, i32) {
    %c0_i32 = arith.constant 0 : i32
    %c0_i32_0 = arith.constant 0 : i32
    return %arg0, %c0_i32 : i32, i32
  }
}

</mosaic_0001>

<llo_original>
// kernel: tpu_custom_call.1
$region0: #{tpu_custom_call.1}
  #allocation0 [shape = 'u32[]', space=smem, size = 0x4, offset = 0x4, fixed_abs, tag = 'smem constant byte address 0x4 - core index']
  #allocation1 [shape = 'u32[144,128]{1,0:T(1,128)}', space=vmem, size = 0x12000, scoped, tag = 'internal scratch']
  %s0 = inlined_call_operand.hbm [shape: f32[24,384], index: 0, kind: input, shape index: {}]
  %s1 = inlined_call_operand.hbm [shape: f32[384,128], index: 1, kind: input, shape index: {}]
  %s2 = inlined_call_operand.vmem [shape: f32[1,128], index: 2, kind: input, shape index: {}]
  %s3 = inlined_call_operand.hbm [shape: f32[24,128], index: 3, kind: output, shape index: {}]
  %s4 = sld [smem:[#allocation0]]
  $region30: #{tpu_custom_call.1} parent=0
    _
  %s6 = ssub.s32 1, %s4
  %s7 = scalar_select 0, %s6, %s4
  $region1: #{tpu_custom_call.1} parent=0
    #allocation2 [shape = 'u8[36864]{0}', space=vmem, size = 0x9000, scoped, tag = 'input window, operand 0, single buffered']
    #allocation3 [shape = 's32[1]{0}', space=sflag, size = 0x4, scoped, tag = 'scoped memory for tpu_custom_call.1']
    #allocation4 [shape = 's32[1]{0}', space=sflag, size = 0x4, scoped, tag = 'scoped memory for tpu_custom_call.1']
    #allocation5 [shape = 'u8[196608]{0}', space=vmem, size = 0x30000, scoped, tag = 'input window, operand 1, single buffered']
    #allocation6 [shape = 's32[1]{0}', space=sflag, size = 0x4, scoped, tag = 'scoped memory for tpu_custom_call.1']
    #allocation7 [shape = 'u8[12288]{0}', space=vmem, size = 0x3000, scoped, tag = 'output window, operand 0, single buffered']
    %8 = vsyncpa [#allocation3], 0
    %9 = vsyncpa [#allocation6], 0
    %10 = vsyncpa [#allocation4], 0
    // Predicated region
    $region2: #{tpu_custom_call.1} parent=1 // pred_check
      _
    $region3: #{tpu_custom_call.1} parent=1 // pred_check_branch
      %12 = sbr.rel (0) target = $region5
    $region4: #{tpu_custom_call.1} parent=1 // pred_region
      %s14 = ssub.s32 1152, 1152
      %15 = vsyncadd [#allocation3], %s14
      %s16 = sshll.u32 [#allocation2], 4
      %s17 = int_to_ptr.vmem [resolvable:$true] %s16
      %22 = dma.hbm_to_vmem [thread:$0]  %s0, 1152, %s17, [#allocation3], 384, 384, 24
    $region5: #{tpu_custom_call.1} parent=1 // pred_fallthru
      _
    // Predicated region
    $region6: #{tpu_custom_call.1} parent=1 // pred_check
      _
    $region7: #{tpu_custom_call.1} parent=1 // pred_check_branch
      %24 = sbr.rel (0) target = $region9
    $region8: #{tpu_custom_call.1} parent=1 // pred_region
      %s26 = ssub.s32 6144, 6144
      %27 = vsyncadd [#allocation6], %s26
      %s28 = sshll.u32 [#allocation5], 4
      %s29 = int_to_ptr.vmem [resolvable:$true] %s28
      %34 = dma.hbm_to_vmem [thread:$0]  %s1, 6144, %s29, [#allocation6], 128, 128, 8
    $region9: #{tpu_custom_call.1} parent=1 // pred_fallthru
      _
    // Predicated region
    $region10: #{tpu_custom_call.1} parent=1 // pred_check
      _
    $region11: #{tpu_custom_call.1} parent=1 // pred_check_branch
      %36 = sbr.rel (0) target = $region13
    $region12: #{tpu_custom_call.1} parent=1 // pred_region
      _
    $region13: #{tpu_custom_call.1} parent=1 // pred_fallthru
      _
    // Predicated region
    $region14: #{tpu_custom_call.1} parent=1 // pred_check
      _
    $region15: #{tpu_custom_call.1} parent=1 // pred_check_branch
      %38 = sbr.rel (0) target = $region17
    $region16: #{tpu_custom_call.1} parent=1 // pred_region
      %39 = dma.done [#allocation3], 1152
    $region17: #{tpu_custom_call.1} parent=1 // pred_fallthru
      _
    // Predicated region
    $region18: #{tpu_custom_call.1} parent=1 // pred_check
      _
    $region19: #{tpu_custom_call.1} parent=1 // pred_check_branch
      %41 = sbr.rel (0) target = $region21
    $region20: #{tpu_custom_call.1} parent=1 // pred_region
      %42 = dma.done [#allocation6], 6144
    $region21: #{tpu_custom_call.1} parent=1 // pred_fallthru
      _
    %v43 = vld [vmem:[#allocation2] sm:$0xff]
    %v44 = vld [vmem:[#allocation2 + $0x8] sm:$0xff]
    %v45 = vld [vmem:[#allocation2 + $0x10] sm:$0xff]
    %v46 = vld [vmem:[#allocation2 + $0x18] sm:$0xff]
    %v47 = vld [vmem:[#allocation2 + $0x20] sm:$0xff]
    %v48 = vld [vmem:[#allocation2 + $0x28] sm:$0xff]
    %v49 = vld [vmem:[#allocation2 + $0x30] sm:$0xff]
    %v50 = vld [vmem:[#allocation2 + $0x38] sm:$0xff]
    %v51 = vld [vmem:[#allocation2 + $0x40] sm:$0xff]
    %v52 = vld [vmem:[#allocation5] sm:$0xff]
    %v53 = vld [vmem:[#allocation5 + $0x8] sm:$0xff]
    %v54 = vld [vmem:[#allocation5 + $0x10] sm:$0xff]
    %v55 = vld [vmem:[#allocation5 + $0x18] sm:$0xff]
    %v56 = vld [vmem:[#allocation5 + $0x20] sm:$0xff]
    %v57 = vld [vmem:[#allocation5 + $0x28] sm:$0xff]
    %v58 = vld [vmem:[#allocation5 + $0x30] sm:$0xff]
    %v59 = vld [vmem:[#allocation5 + $0x38] sm:$0xff]
    %v60 = vld [vmem:[#allocation5 + $0x40] sm:$0xff]
    %v61 = vld [vmem:[#allocation5 + $0x48] sm:$0xff]
    %v62 = vld [vmem:[#allocation5 + $0x50] sm:$0xff]
    %v63 = vld [vmem:[#allocation5 + $0x58] sm:$0xff]
    %v64 = vld [vmem:[#allocation5 + $0x60] sm:$0xff]
    %v65 = vld [vmem:[#allocation5 + $0x68] sm:$0xff]
    %v66 = vld [vmem:[#allocation5 + $0x70] sm:$0xff]
    %v67 = vld [vmem:[#allocation5 + $0x78] sm:$0xff]
    %v68 = vld [vmem:[#allocation5 + $0x80] sm:$0xff]
    %v69 = vld [vmem:[#allocation5 + $0x88] sm:$0xff]
    %v70 = vld [vmem:[#allocation5 + $0x90] sm:$0xff]
    %v71 = vld [vmem:[#allocation5 + $0x98] sm:$0xff]
    %v72 = vld [vmem:[#allocation5 + $0xa0] sm:$0xff]
    %v73 = vld [vmem:[#allocation5 + $0xa8] sm:$0xff]
    %v74 = vld [vmem:[#allocation5 + $0xb0] sm:$0xff]
    %v75 = vld [vmem:[#allocation5 + $0xb8] sm:$0xff]
    %v76 = vld [vmem:[#allocation5 + $0xc0] sm:$0xff]
    %v77 = vld [vmem:[#allocation5 + $0xc8] sm:$0xff]
    %v78 = vld [vmem:[#allocation5 + $0xd0] sm:$0xff]
    %v79 = vld [vmem:[#allocation5 + $0xd8] sm:$0xff]
    %v80 = vld [vmem:[#allocation5 + $0xe0] sm:$0xff]
    %v81 = vld [vmem:[#allocation5 + $0xe8] sm:$0xff]
    %v82 = vld [vmem:[#allocation5 + $0xf0] sm:$0xff]
    %v83 = vld [vmem:[#allocation5 + $0xf8] sm:$0xff]
    %v84 = vld [vmem:[#allocation5 + $0x100] sm:$0xff]
    %v85 = vld [vmem:[#allocation5 + $0x108] sm:$0xff]
    %v86 = vld [vmem:[#allocation5 + $0x110] sm:$0xff]
    %v87 = vld [vmem:[#allocation5 + $0x118] sm:$0xff]
    %v88 = vld [vmem:[#allocation5 + $0x120] sm:$0xff]
    %v89 = vld [vmem:[#allocation5 + $0x128] sm:$0xff]
    %v90 = vld [vmem:[#allocation5 + $0x130] sm:$0xff]
    %v91 = vld [vmem:[#allocation5 + $0x138] sm:$0xff]
    %v92 = vld [vmem:[#allocation5 + $0x140] sm:$0xff]
    %v93 = vld [vmem:[#allocation5 + $0x148] sm:$0xff]
    %v94 = vld [vmem:[#allocation5 + $0x150] sm:$0xff]
    %v95 = vld [vmem:[#allocation5 + $0x158] sm:$0xff]
    %v96 = vld [vmem:[#allocation5 + $0x160] sm:$0xff]
    %v97 = vld [vmem:[#allocation5 + $0x168] sm:$0xff]
    %v98 = vld [vmem:[#allocation5 + $0x170] sm:$0xff]
    %v99 = vld [vmem:[#allocation5 + $0x178] sm:$0xff]
    %v100 = vld [vmem:[%s2] sm:$0x1]
    %v102 = vlaneseq
    %v103 = vshrl.u32 %v102, 7
    %v104 = vsub.s32 0, %v103
    %v105 = vrot.slane %v100, %v104
    %107 = vmatprep.subr.mxu0 0.0
    %108 = vmatpush1.msra.mxu0 %v52
    %109 = vmatprep.subr.mxu0 0.0
    %110 = vmatpush1.msra.mxu0 %v53
    %111 = vmatprep.subr.mxu0 0.0
    %112 = vmatpush1.msra.mxu0 %v54
    %113 = vmatprep.subr.mxu0 0.0
    %114 = vmatpush1.msra.mxu0 %v55
    %115 = vmatprep.subr.mxu0 0.0
    %116 = vmatpush1.msra.mxu0 %v56
    %117 = vmatprep.subr.mxu0 0.0
    %118 = vmatpush1.msra.mxu0 %v57
    %119 = vmatprep.subr.mxu0 0.0
    %120 = vmatpush1.msra.mxu0 %v58
    %121 = vmatprep.subr.mxu0 0.0
    %122 = vmatpush1.msra.mxu0 %v59
    %123 = vmatprep.subr.mxu0 0.0
    %124 = vmatpush1.msra.mxu0 %v60
    %125 = vmatprep.subr.mxu0 0.0
    %126 = vmatpush1.msra.mxu0 %v61
    %127 = vmatprep.subr.mxu0 0.0
    %128 = vmatpush1.msra.mxu0 %v62
    %129 = vmatprep.subr.mxu0 0.0
    %130 = vmatpush1.msra.mxu0 %v63
    %131 = vmatprep.subr.mxu0 0.0
    %132 = vmatpush1.msra.mxu0 %v64
    %133 = vmatprep.subr.mxu0 0.0
    %134 = vmatpush1.msra.mxu0 %v65
    %135 = vmatprep.subr.mxu0 0.0
    %136 = vmatpush1.msra.mxu0 %v66
    %137 = vmatprep.subr.mxu0 0.0
    %138 = vmatpush1.msra.mxu0 %v67
    %139 = vmatprep.subr.mxu0 0.0
    %140 = vmatpush1.msra.mxu0 %v68
    %141 = vmatprep.subr.mxu0 0.0
    %142 = vmatpush1.msra.mxu0 %v69
    %143 = vmatprep.subr.mxu0 0.0
    %144 = vmatpush1.msra.mxu0 %v70
    %145 = vmatprep.subr.mxu0 0.0
    %146 = vmatpush1.msra.mxu0 %v71
    %147 = vmatprep.subr.mxu0 0.0
    %148 = vmatpush1.msra.mxu0 %v72
    %149 = vmatprep.subr.mxu0 0.0
    %150 = vmatpush1.msra.mxu0 %v73
    %151 = vmatprep.subr.mxu0 0.0
    %152 = vmatpush1.msra.mxu0 %v74
    %153 = vmatprep.subr.mxu0 0.0
    %154 = vmatpush1.msra.mxu0 %v75
    %155 = vmatprep.subr.mxu0 0.0
    %156 = vmatpush1.msra.mxu0 %v76
    %157 = vmatprep.subr.mxu0 0.0
    %158 = vmatpush1.msra.mxu0 %v77
    %159 = vmatprep.subr.mxu0 0.0
    %160 = vmatpush1.msra.mxu0 %v78
    %161 = vmatprep.subr.mxu0 0.0
    %162 = vmatpush1.msra.mxu0 %v79
    %163 = vmatprep.subr.mxu0 0.0
    %164 = vmatpush1.msra.mxu0 %v80
    %165 = vmatprep.subr.mxu0 0.0
    %166 = vmatpush1.msra.mxu0 %v81
    %167 = vmatprep.subr.mxu0 0.0
    %168 = vmatpush1.msra.mxu0 %v82
    %169 = vmatprep.subr.mxu0 0.0
    %170 = vmatpush1.msra.mxu0 %v83
    %171 = vmatprep.mubr.f32.mxu0 %v44
    %172 = vmatmul.mubr.f32.gmra.mrb[0].mxu0 %v43
    %v173 = vpop.f32.mrb[0].mxu0
    %v174 = vadd.f32 %v105, %v173
    %v175 = vpop.f32.mrb[0].mxu0
    %176 = vmatprep.mubr.f32.mxu0 %v47
    %177 = vmatmul.mubr.f32.gmra.mrb[0].mxu0 %v46
    %v178 = vpop.f32.mrb[0].mxu0
    %v179 = vadd.f32 %v105, %v178
    %v180 = vpop.f32.mrb[0].mxu0
    %181 = vmatprep.mubr.f32.mxu0 %v50
    %182 = vmatmul.mubr.f32.gmra.mrb[0].mxu0 %v49
    %v183 = vpop.f32.mrb[0].mxu0
    %v184 = vadd.f32 %v105, %v183
    %v185 = vpop.f32.mrb[0].mxu0
    %186 = vdwg.mxu0
    %187 = vmatprep.subr.mxu0 0.0
    %188 = vmatpush1.msra.mxu0 %v84
    %189 = vmatprep.subr.mxu0 0.0
    %190 = vmatpush1.msra.mxu0 %v85
    %191 = vmatprep.subr.mxu0 0.0
    %192 = vmatpush1.msra.mxu0 %v86
    %193 = vmatprep.subr.mxu0 0.0
    %194 = vmatpush1.msra.mxu0 %v87
    %195 = vmatprep.subr.mxu0 0.0
    %196 = vmatpush1.msra.mxu0 %v88
    %197 = vmatprep.subr.mxu0 0.0
    %198 = vmatpush1.msra.mxu0 %v89
    %199 = vmatprep.subr.mxu0 0.0
    %200 = vmatpush1.msra.mxu0 %v90
    %201 = vmatprep.subr.mxu0 0.0
    %202 = vmatpush1.msra.mxu0 %v91
    %203 = vmatprep.subr.mxu0 0.0
    %204 = vmatpush1.msra.mxu0 %v92
    %205 = vmatprep.subr.mxu0 0.0
    %206 = vmatpush1.msra.mxu0 %v93
    %207 = vmatprep.subr.mxu0 0.0
    %208 = vmatpush1.msra.mxu0 %v94
    %209 = vmatprep.subr.mxu0 0.0
    %210 = vmatpush1.msra.mxu0 %v95
    %211 = vmatprep.subr.mxu0 0.0
    %212 = vmatpush1.msra.mxu0 %v96
    %213 = vmatprep.subr.mxu0 0.0
    %214 = vmatpush1.msra.mxu0 %v97
    %215 = vmatprep.subr.mxu0 0.0
    %216 = vmatpush1.msra.mxu0 %v98
    %217 = vmatprep.subr.mxu0 0.0
    %218 = vmatpush1.msra.mxu0 %v99
    %219 = vmatprep.subr.mxu0 0.0
    %220 = vmatpush1.msra.mxu0 0.0
    %221 = vmatprep.subr.mxu0 0.0
    %222 = vmatpush1.msra.mxu0 0.0
    %223 = vmatprep.subr.mxu0 0.0
    %224 = vmatpush1.msra.mxu0 0.0
    %225 = vmatprep.subr.mxu0 0.0
    %226 = vmatpush1.msra.mxu0 0.0
    %227 = vmatprep.subr.mxu0 0.0
    %228 = vmatpush1.msra.mxu0 0.0
    %229 = vmatprep.subr.mxu0 0.0
    %230 = vmatpush1.msra.mxu0 0.0
    %231 = vmatprep.subr.mxu0 0.0
    %232 = vmatpush1.msra.mxu0 0.0
    %233 = vmatprep.subr.mxu0 0.0
    %234 = vmatpush1.msra.mxu0 0.0
    %235 = vmatprep.subr.mxu0 0.0
    %236 = vmatpush1.msra.mxu0 0.0
    %237 = vmatprep.subr.mxu0 0.0
    %238 = vmatpush1.msra.mxu0 0.0
    %239 = vmatprep.subr.mxu0 0.0
    %240 = vmatpush1.msra.mxu0 0.0
    %241 = vmatprep.subr.mxu0 0.0
    %242 = vmatpush1.msra.mxu0 0.0
    %243 = vmatprep.subr.mxu0 0.0
    %244 = vmatpush1.msra.mxu0 0.0
    %245 = vmatprep.subr.mxu0 0.0
    %246 = vmatpush1.msra.mxu0 0.0
    %247 = vmatprep.subr.mxu0 0.0
    %248 = vmatpush1.msra.mxu0 0.0
    %249 = vmatprep.subr.mxu0 0.0
    %250 = vmatpush1.msra.mxu0 0.0
    %251 = vmatprep.mubr.f32.mxu0 0.0
    %252 = vmatmul.mubr.f32.gmra.mrb[0].mxu0 %v45
    %v253 = vpop.f32.mrb[0].mxu0
    %v254 = vadd.f32 %v174, %v253
    %v255 = vpop.f32.mrb[0].mxu0
    %256 = vmatprep.mubr.f32.mxu0 0.0
    %257 = vmatmul.mubr.f32.gmra.mrb[0].mxu0 %v48
    %v258 = vpop.f32.mrb[0].mxu0
    %v259 = vadd.f32 %v179, %v258
    %v260 = vpop.f32.mrb[0].mxu0
    %261 = vmatprep.mubr.f32.mxu0 0.0
    %262 = vmatmul.mubr.f32.gmra.mrb[0].mxu0 %v51
    %v263 = vpop.f32.mrb[0].mxu0
    %v264 = vadd.f32 %v184, %v263
    %v265 = vpop.f32.mrb[0].mxu0
    %266 = vdwg.mxu0
    %267 = vst [vmem:[#allocation7] sm:$0xff] %v254
    %268 = vst [vmem:[#allocation7 + $0x8] sm:$0xff] %v259
    %269 = vst [vmem:[#allocation7 + $0x10] sm:$0xff] %v264
    // Predicated region
    $region22: #{tpu_custom_call.1} parent=1 // pred_check
      _
    $region23: #{tpu_custom_call.1} parent=1 // pred_check_branch
      %271 = sbr.rel (0) target = $region25
    $region24: #{tpu_custom_call.1} parent=1 // pred_region
      %s273 = ssub.s32 384, 384
      %274 = vsyncadd [#allocation4], %s273
      %s275 = sshll.u32 [#allocation7], 4
      %s276 = int_to_ptr.vmem [resolvable:$true] %s275
      %281 = dma.vmem_to_hbm [thread:$0]  %s276, 384, %s3, [#allocation4], 128, 128, 8
    $region25: #{tpu_custom_call.1} parent=1 // pred_fallthru
      _
    // Predicated region
    $region26: #{tpu_custom_call.1} parent=1 // pred_check
      _
    $region27: #{tpu_custom_call.1} parent=1 // pred_check_branch
      %283 = sbr.rel (0) target = $region29
    $region28: #{tpu_custom_call.1} parent=1 // pred_region
      %284 = dma.done [#allocation4], 384
    $region29: #{tpu_custom_call.1} parent=1 // pred_fallthru
      _
    %285 = vsyncpa [#allocation3], 1
    %286 = vsyncpa [#allocation6], 1
    %287 = vsyncpa [#allocation4], 1

// kernel: tpu_custom_call.1
$region0: #{tpu_custom_call.1}
  #allocation0 [shape = 'u32[]', space=smem, size = 0x4, offset = 0x4, fixed_abs, tag = 'smem constant byte address 0x4 - core index']
  #allocation1 [shape = 'u32[144,128]{1,0:T(1,128)}', space=vmem, size = 0x12000, scoped, tag = 'internal scratch']
  %s0 = inlined_call_operand.hbm [shape: f32[24,384], index: 0, kind: input, shape index: {}]
  %s1 = inlined_call_operand.hbm [shape: f32[384,128], index: 1, kind: input, shape index: {}]
  %s2 = inlined_call_operand.vmem [shape: f32[1,128], index: 2, kind: input, shape index: {}]
  %s3 = inlined_call_operand.hbm [shape: f32[24,128], index: 3, kind: output, shape index: {}]
  %s4 = sld [smem:[#allocation0]]
  $region30: #{tpu_custom_call.1} parent=0
    _
  %s6 = ssub.s32 1, %s4
  %s7 = scalar_select 0, %s6, %s4
  $region1: #{tpu_custom_call.1} parent=0
    #allocation2 [shape = 'u8[36864]{0}', space=vmem, size = 0x9000, scoped, tag = 'input window, operand 0, single buffered']
    #allocation3 [shape = 's32[1]{0}', space=sflag, size = 0x4, scoped, tag = 'scoped memory for tpu_custom_call.1']
    #allocation4 [shape = 's32[1]{0}', space=sflag, size = 0x4, scoped, tag = 'scoped memory for tpu_custom_call.1']
    #allocation5 [shape = 'u8[196608]{0}', space=vmem, size = 0x30000, scoped, tag = 'input window, operand 1, single buffered']
    #allocation6 [shape = 's32[1]{0}', space=sflag, size = 0x4, scoped, tag = 'scoped memory for tpu_custom_call.1']
    #allocation7 [shape = 'u8[12288]{0}', space=vmem, size = 0x3000, scoped, tag = 'output window, operand 0, single buffered']
    %8 = vsyncpa [#allocation3], 0
    %9 = vsyncpa [#allocation6], 0
    %10 = vsyncpa [#allocation4], 0
    // Predicated region
    $region2: #{tpu_custom_call.1} parent=1 // pred_check
      _
    $region3: #{tpu_custom_call.1} parent=1 // pred_check_branch
      %12 = sbr.rel (0) target = $region5
    $region4: #{tpu_custom_call.1} parent=1 // pred_region
      %s14 = ssub.s32 1152, 1152
      %15 = vsyncadd [#allocation3], %s14
      %s16 = sshll.u32 [#allocation2], 4
      %s17 = int_to_ptr.vmem [resolvable:$true] %s16
      %22 = dma.hbm_to_vmem [thread:$0]  %s0, 1152, %s17, [#allocation3], 384, 384, 24
    $region5: #{tpu_custom_call.1} parent=1 // pred_fallthru
      _
    // Predicated region
    $region6: #{tpu_custom_call.1} parent=1 // pred_check
      _
    $region7: #{tpu_custom_call.1} parent=1 // pred_check_branch
      %24 = sbr.rel (0) target = $region9
    $region8: #{tpu_custom_call.1} parent=1 // pred_region
      %s26 = ssub.s32 6144, 6144
      %27 = vsyncadd [#allocation6], %s26
      %s28 = sshll.u32 [#allocation5], 4
      %s29 = int_to_ptr.vmem [resolvable:$true] %s28
      %34 = dma.hbm_to_vmem [thread:$0]  %s1, 6144, %s29, [#allocation6], 128, 128, 8
    $region9: #{tpu_custom_call.1} parent=1 // pred_fallthru
      _
    // Predicated region
    $region10: #{tpu_custom_call.1} parent=1 // pred_check
      _
    $region11: #{tpu_custom_call.1} parent=1 // pred_check_branch
      %36 = sbr.rel (0) target = $region13
    $region12: #{tpu_custom_call.1} parent=1 // pred_region
      _
    $region13: #{tpu_custom_call.1} parent=1 // pred_fallthru
      _
    // Predicated region
    $region14: #{tpu_custom_call.1} parent=1 // pred_check
      _
    $region15: #{tpu_custom_call.1} parent=1 // pred_check_branch
      %38 = sbr.rel (0) target = $region17
    $region16: #{tpu_custom_call.1} parent=1 // pred_region
      %39 = dma.done [#allocation3], 1152
    $region17: #{tpu_custom_call.1} parent=1 // pred_fallthru
      _
    // Predicated region
    $region18: #{tpu_custom_call.1} parent=1 // pred_check
      _
    $region19: #{tpu_custom_call.1} parent=1 // pred_check_branch
      %41 = sbr.rel (0) target = $region21
    $region20: #{tpu_custom_call.1} parent=1 // pred_region
      %42 = dma.done [#allocation6], 6144
    $region21: #{tpu_custom_call.1} parent=1 // pred_fallthru
      _
    %v43 = vld [vmem:[#allocation2] sm:$0xff]
    %v44 = vld [vmem:[#allocation2 + $0x8] sm:$0xff]
    %v45 = vld [vmem:[#allocation2 + $0x10] sm:$0xff]
    %v46 = vld [vmem:[#allocation2 + $0x18] sm:$0xff]
    %v47 = vld [vmem:[#allocation2 + $0x20] sm:$0xff]
    %v48 = vld [vmem:[#allocation2 + $0x28] sm:$0xff]
    %v49 = vld [vmem:[#allocation2 + $0x30] sm:$0xff]
    %v50 = vld [vmem:[#allocation2 + $0x38] sm:$0xff]
    %v51 = vld [vmem:[#allocation2 + $0x40] sm:$0xff]
    %v52 = vld [vmem:[#allocation5] sm:$0xff]
    %v53 = vld [vmem:[#allocation5 + $0x8] sm:$0xff]
    %v54 = vld [vmem:[#allocation5 + $0x10] sm:$0xff]
    %v55 = vld [vmem:[#allocation5 + $0x18] sm:$0xff]
    %v56 = vld [vmem:[#allocation5 + $0x20] sm:$0xff]
    %v57 = vld [vmem:[#allocation5 + $0x28] sm:$0xff]
    %v58 = vld [vmem:[#allocation5 + $0x30] sm:$0xff]
    %v59 = vld [vmem:[#allocation5 + $0x38] sm:$0xff]
    %v60 = vld [vmem:[#allocation5 + $0x40] sm:$0xff]
    %v61 = vld [vmem:[#allocation5 + $0x48] sm:$0xff]
    %v62 = vld [vmem:[#allocation5 + $0x50] sm:$0xff]
    %v63 = vld [vmem:[#allocation5 + $0x58] sm:$0xff]
    %v64 = vld [vmem:[#allocation5 + $0x60] sm:$0xff]
    %v65 = vld [vmem:[#allocation5 + $0x68] sm:$0xff]
    %v66 = vld [vmem:[#allocation5 + $0x70] sm:$0xff]
    %v67 = vld [vmem:[#allocation5 + $0x78] sm:$0xff]
    %v68 = vld [vmem:[#allocation5 + $0x80] sm:$0xff]
    %v69 = vld [vmem:[#allocation5 + $0x88] sm:$0xff]
    %v70 = vld [vmem:[#allocation5 + $0x90] sm:$0xff]
    %v71 = vld [vmem:[#allocation5 + $0x98] sm:$0xff]
    %v72 = vld [vmem:[#allocation5 + $0xa0] sm:$0xff]
    %v73 = vld [vmem:[#allocation5 + $0xa8] sm:$0xff]
    %v74 = vld [vmem:[#allocation5 + $0xb0] sm:$0xff]
    %v75 = vld [vmem:[#allocation5 + $0xb8] sm:$0xff]
    %v76 = vld [vmem:[#allocation5 + $0xc0] sm:$0xff]
    %v77 = vld [vmem:[#allocation5 + $0xc8] sm:$0xff]
    %v78 = vld [vmem:[#allocation5 + $0xd0] sm:$0xff]
    %v79 = vld [vmem:[#allocation5 + $0xd8] sm:$0xff]
    %v80 = vld [vmem:[#allocation5 + $0xe0] sm:$0xff]
    %v81 = vld [vmem:[#allocation5 + $0xe8] sm:$0xff]
    %v82 = vld [vmem:[#allocation5 + $0xf0] sm:$0xff]
    %v83 = vld [vmem:[#allocation5 + $0xf8] sm:$0xff]
    %v84 = vld [vmem:[#allocation5 + $0x100] sm:$0xff]
    %v85 = vld [vmem:[#allocation5 + $0x108] sm:$0xff]
    %v86 = vld [vmem:[#allocation5 + $0x110] sm:$0xff]
    %v87 = vld [vmem:[#allocation5 + $0x118] sm:$0xff]
    %v88 = vld [vmem:[#allocation5 + $0x120] sm:$0xff]
    %v89 = vld [vmem:[#allocation5 + $0x128] sm:$0xff]
    %v90 = vld [vmem:[#allocation5 + $0x130] sm:$0xff]
    %v91 = vld [vmem:[#allocation5 + $0x138] sm:$0xff]
    %v92 = vld [vmem:[#allocation5 + $0x140] sm:$0xff]
    %v93 = vld [vmem:[#allocation5 + $0x148] sm:$0xff]
    %v94 = vld [vmem:[#allocation5 + $0x150] sm:$0xff]
    %v95 = vld [vmem:[#allocation5 + $0x158] sm:$0xff]
    %v96 = vld [vmem:[#allocation5 + $0x160] sm:$0xff]
    %v97 = vld [vmem:[#allocation5 + $0x168] sm:$0xff]
    %v98 = vld [vmem:[#allocation5 + $0x170] sm:$0xff]
    %v99 = vld [vmem:[#allocation5 + $0x178] sm:$0xff]
    %v100 = vld [vmem:[%s2] sm:$0x1]
    %v102 = vlaneseq
    %v103 = vshrl.u32 %v102, 7
    %v104 = vsub.s32 0, %v103
    %v105 = vrot.slane %v100, %v104
    %107 = vmatprep.subr.mxu0 0.0
    %108 = vmatpush1.msra.mxu0 %v52
    %109 = vmatprep.subr.mxu0 0.0
    %110 = vmatpush1.msra.mxu0 %v53
    %111 = vmatprep.subr.mxu0 0.0
    %112 = vmatpush1.msra.mxu0 %v54
    %113 = vmatprep.subr.mxu0 0.0
    %114 = vmatpush1.msra.mxu0 %v55
    %115 = vmatprep.subr.mxu0 0.0
    %116 = vmatpush1.msra.mxu0 %v56
    %117 = vmatprep.subr.mxu0 0.0
    %118 = vmatpush1.msra.mxu0 %v57
    %119 = vmatprep.subr.mxu0 0.0
    %120 = vmatpush1.msra.mxu0 %v58
    %121 = vmatprep.subr.mxu0 0.0
    %122 = vmatpush1.msra.mxu0 %v59
    %123 = vmatprep.subr.mxu0 0.0
    %124 = vmatpush1.msra.mxu0 %v60
    %125 = vmatprep.subr.mxu0 0.0
    %126 = vmatpush1.msra.mxu0 %v61
    %127 = vmatprep.subr.mxu0 0.0
    %128 = vmatpush1.msra.mxu0 %v62
    %129 = vmatprep.subr.mxu0 0.0
    %130 = vmatpush1.msra.mxu0 %v63
    %131 = vmatprep.subr.mxu0 0.0
    %132 = vmatpush1.msra.mxu0 %v64
    %133 = vmatprep.subr.mxu0 0.0
    %134 = vmatpush1.msra.mxu0 %v65
    %135 = vmatprep.subr.mxu0 0.0
    %136 = vmatpush1.msra.mxu0 %v66
    %137 = vmatprep.subr.mxu0 0.0
    %138 = vmatpush1.msra.mxu0 %v67
    %139 = vmatprep.subr.mxu0 0.0
    %140 = vmatpush1.msra.mxu0 %v68
    %141 = vmatprep.subr.mxu0 0.0
    %142 = vmatpush1.msra.mxu0 %v69
    %143 = vmatprep.subr.mxu0 0.0
    %144 = vmatpush1.msra.mxu0 %v70
    %145 = vmatprep.subr.mxu0 0.0
    %146 = vmatpush1.msra.mxu0 %v71
    %147 = vmatprep.subr.mxu0 0.0
    %148 = vmatpush1.msra.mxu0 %v72
    %149 = vmatprep.subr.mxu0 0.0
    %150 = vmatpush1.msra.mxu0 %v73
    %151 = vmatprep.subr.mxu0 0.0
    %152 = vmatpush1.msra.mxu0 %v74
    %153 = vmatprep.subr.mxu0 0.0
    %154 = vmatpush1.msra.mxu0 %v75
    %155 = vmatprep.subr.mxu0 0.0
    %156 = vmatpush1.msra.mxu0 %v76
    %157 = vmatprep.subr.mxu0 0.0
    %158 = vmatpush1.msra.mxu0 %v77
    %159 = vmatprep.subr.mxu0 0.0
    %160 = vmatpush1.msra.mxu0 %v78
    %161 = vmatprep.subr.mxu0 0.0
    %162 = vmatpush1.msra.mxu0 %v79
    %163 = vmatprep.subr.mxu0 0.0
    %164 = vmatpush1.msra.mxu0 %v80
    %165 = vmatprep.subr.mxu0 0.0
    %166 = vmatpush1.msra.mxu0 %v81
    %167 = vmatprep.subr.mxu0 0.0
    %168 = vmatpush1.msra.mxu0 %v82
    %169 = vmatprep.subr.mxu0 0.0
    %170 = vmatpush1.msra.mxu0 %v83
    %171 = vmatprep.mubr.f32.mxu0 %v44
    %172 = vmatmul.mubr.f32.gmra.mrb[0].mxu0 %v43
    %v173 = vpop.f32.mrb[0].mxu0
    %v174 = vadd.f32 %v105, %v173
    %v175 = vpop.f32.mrb[0].mxu0
    %176 = vmatprep.mubr.f32.mxu0 %v47
    %177 = vmatmul.mubr.f32.gmra.mrb[0].mxu0 %v46
    %v178 = vpop.f32.mrb[0].mxu0
    %v179 = vadd.f32 %v105, %v178
    %v180 = vpop.f32.mrb[0].mxu0
    %181 = vmatprep.mubr.f32.mxu0 %v50
    %182 = vmatmul.mubr.f32.gmra.mrb[0].mxu0 %v49
    %v183 = vpop.f32.mrb[0].mxu0
    %v184 = vadd.f32 %v105, %v183
    %v185 = vpop.f32.mrb[0].mxu0
    %186 = vdwg.mxu0
    %187 = vmatprep.subr.mxu0 0.0
    %188 = vmatpush1.msra.mxu0 %v84
    %189 = vmatprep.subr.mxu0 0.0
    %190 = vmatpush1.msra.mxu0 %v85
    %191 = vmatprep.subr.mxu0 0.0
    %192 = vmatpush1.msra.mxu0 %v86
    %193 = vmatprep.subr.mxu0 0.0
    %194 = vmatpush1.msra.mxu0 %v87
    %195 = vmatprep.subr.mxu0 0.0
    %196 = vmatpush1.msra.mxu0 %v88
    %197 = vmatprep.subr.mxu0 0.0
    %198 = vmatpush1.msra.mxu0 %v89
    %199 = vmatprep.subr.mxu0 0.0
    %200 = vmatpush1.msra.mxu0 %v90
    %201 = vmatprep.subr.mxu0 0.0
    %202 = vmatpush1.msra.mxu0 %v91
    %203 = vmatprep.subr.mxu0 0.0
    %204 = vmatpush1.msra.mxu0 %v92
    %205 = vmatprep.subr.mxu0 0.0
    %206 = vmatpush1.msra.mxu0 %v93
    %207 = vmatprep.subr.mxu0 0.0
    %208 = vmatpush1.msra.mxu0 %v94
    %209 = vmatprep.subr.mxu0 0.0
    %210 = vmatpush1.msra.mxu0 %v95
    %211 = vmatprep.subr.mxu0 0.0
    %212 = vmatpush1.msra.mxu0 %v96
    %213 = vmatprep.subr.mxu0 0.0
    %214 = vmatpush1.msra.mxu0 %v97
    %215 = vmatprep.subr.mxu0 0.0
    %216 = vmatpush1.msra.mxu0 %v98
    %217 = vmatprep.subr.mxu0 0.0
    %218 = vmatpush1.msra.mxu0 %v99
    %219 = vmatprep.subr.mxu0 0.0
    %220 = vmatpush1.msra.mxu0 0.0
    %221 = vmatprep.subr.mxu0 0.0
    %222 = vmatpush1.msra.mxu0 0.0
    %223 = vmatprep.subr.mxu0 0.0
    %224 = vmatpush1.msra.mxu0 0.0
    %225 = vmatprep.subr.mxu0 0.0
    %226 = vmatpush1.msra.mxu0 0.0
    %227 = vmatprep.subr.mxu0 0.0
    %228 = vmatpush1.msra.mxu0 0.0
    %229 = vmatprep.subr.mxu0 0.0
    %230 = vmatpush1.msra.mxu0 0.0
    %231 = vmatprep.subr.mxu0 0.0
    %232 = vmatpush1.msra.mxu0 0.0
    %233 = vmatprep.subr.mxu0 0.0
    %234 = vmatpush1.msra.mxu0 0.0
    %235 = vmatprep.subr.mxu0 0.0
    %236 = vmatpush1.msra.mxu0 0.0
    %237 = vmatprep.subr.mxu0 0.0
    %238 = vmatpush1.msra.mxu0 0.0
    %239 = vmatprep.subr.mxu0 0.0
    %240 = vmatpush1.msra.mxu0 0.0
    %241 = vmatprep.subr.mxu0 0.0
    %242 = vmatpush1.msra.mxu0 0.0
    %243 = vmatprep.subr.mxu0 0.0
    %244 = vmatpush1.msra.mxu0 0.0
    %245 = vmatprep.subr.mxu0 0.0
    %246 = vmatpush1.msra.mxu0 0.0
    %247 = vmatprep.subr.mxu0 0.0
    %248 = vmatpush1.msra.mxu0 0.0
    %249 = vmatprep.subr.mxu0 0.0
    %250 = vmatpush1.msra.mxu0 0.0
    %251 = vmatprep.mubr.f32.mxu0 0.0
    %252 = vmatmul.mubr.f32.gmra.mrb[0].mxu0 %v45
    %v253 = vpop.f32.mrb[0].mxu0
    %v254 = vadd.f32 %v174, %v253
    %v255 = vpop.f32.mrb[0].mxu0
    %256 = vmatprep.mubr.f32.mxu0 0.0
    %257 = vmatmul.mubr.f32.gmra.mrb[0].mxu0 %v48
    %v258 = vpop.f32.mrb[0].mxu0
    %v259 = vadd.f32 %v179, %v258
    %v260 = vpop.f32.mrb[0].mxu0
    %261 = vmatprep.mubr.f32.mxu0 0.0
    %262 = vmatmul.mubr.f32.gmra.mrb[0].mxu0 %v51
    %v263 = vpop.f32.mrb[0].mxu0
    %v264 = vadd.f32 %v184, %v263
    %v265 = vpop.f32.mrb[0].mxu0
    %266 = vdwg.mxu0
    %267 = vst [vmem:[#allocation7] sm:$0xff] %v254
    %268 = vst [vmem:[#allocation7 + $0x8] sm:$0xff] %v259
    %269 = vst [vmem:[#allocation7 + $0x10] sm:$0xff] %v264
    // Predicated region
    $region22: #{tpu_custom_call.1} parent=1 // pred_check
      _
    $region23: #{tpu_custom_call.1} parent=1 // pred_check_branch
      %271 = sbr.rel (0) target = $region25
    $region24: #{tpu_custom_call.1} parent=1 // pred_region
      %s273 = ssub.s32 384, 384
      %274 = vsyncadd [#allocation4], %s273
      %s275 = sshll.u32 [#allocation7], 4
      %s276 = int_to_ptr.vmem [resolvable:$true] %s275
      %281 = dma.vmem_to_hbm [thread:$0]  %s276, 384, %s3, [#allocation4], 128, 128, 8
    $region25: #{tpu_custom_call.1} parent=1 // pred_fallthru
      _
    // Predicated region
    $region26: #{tpu_custom_call.1} parent=1 // pred_check
      _
    $region27: #{tpu_custom_call.1} parent=1 // pred_check_branch
      %283 = sbr.rel (0) target = $region29
    $region28: #{tpu_custom_call.1} parent=1 // pred_region
      %284 = dma.done [#allocation4], 384
    $region29: #{tpu_custom_call.1} parent=1 // pred_fallthru
      _
    %285 = vsyncpa [#allocation3], 1
    %286 = vsyncpa [#allocation6], 1
    %287 = vsyncpa [#allocation4], 1

</llo_original>
